<compile_context>
chip_gen: v7x
topology: tpu7x:2x2x1
jax: 0.10.0
libtpu: 0.0.40
codegen_flags: <defaults>
</compile_context>

<pallas_src>
import jax
import jax.numpy as jnp
from jax.experimental import pallas as pl
from jax.experimental.pallas import tpu as pltpu


def _make_onehot_gather_kernel(B, TB, C, D):
    need_row_mask = (B % TB) != 0

    def kernel(x_ref, labels_ref, centers_ref, out_ref):
        # x_ref:       (TB, D)   features for this batch block
        # labels_ref:  (TB, 1)   int32 labels for this block
        # centers_ref: (C, D)    full centers table, resident in VMEM
        # out_ref:     (1, 1, D) per-block partial sums (lane-dense)
        x = x_ref[...].astype(jnp.float32)
        lbl = labels_ref[...]                                        # (TB, 1)
        classes = jax.lax.broadcasted_iota(jnp.int32, (TB, C), 1)    # (TB, C)
        onehot = (lbl == classes).astype(jnp.float32)
        # MXU gather: onehot @ centers == centers[labels]. HIGHEST precision
        # keeps the f32 selection exact (default could drop to 1-pass bf16).
        gathered = jnp.dot(
            onehot,
            centers_ref[...].astype(jnp.float32),
            precision=jax.lax.Precision.HIGHEST,
            preferred_element_type=jnp.float32,
        )                                                            # (TB, D)
        diff = x - gathered
        sq = diff * diff
        if need_row_mask:
            # Ragged last batch block: zero rows past the true batch size.
            row = pl.program_id(0) * TB + jax.lax.broadcasted_iota(
                jnp.int32, (TB, 1), 0)
            sq = jnp.where(row < B, sq, 0.0)
        # Sublane (XLU) reduction -> lane-dense (1, D) partial per block.
        out_ref[...] = jnp.sum(sq, axis=0, keepdims=True)[None]

    return kernel


def _make_pregather_kernel(B, TB):
    need_row_mask = (B % TB) != 0

    def kernel(x_ref, gathered_ref, out_ref):
        # x_ref / gathered_ref: (TB, D) streaming blocks; out_ref: (1, 1, D)
        diff = x_ref[...].astype(jnp.float32) - gathered_ref[...].astype(jnp.float32)
        sq = diff * diff
        if need_row_mask:
            row = pl.program_id(0) * TB + jax.lax.broadcasted_iota(
                jnp.int32, (TB, 1), 0)
            sq = jnp.where(row < B, sq, 0.0)
        out_ref[...] = jnp.sum(sq, axis=0, keepdims=True)[None]

    return kernel


def center_loss(x, labels, centers, *, block_rows=None, gather_in_kernel=None):
    """CenterLoss forward.  x:(B,D) f32, labels:(B,) int, centers:(C,D) or (1,C,D)."""
    x = jnp.asarray(x)
    centers = jnp.asarray(centers)
    if centers.ndim == 3:        # nn.Parameter layout (1, classes_num, feature_dim)
        centers = centers.reshape(centers.shape[-2], centers.shape[-1])
    labels = jnp.asarray(labels).astype(jnp.int32)

    B, D = x.shape
    C = centers.shape[0]

    # Gather strategy: resident-centers + one-hot MXU matmul when the table is
    # comfortably small; otherwise pre-gather in the wrapper so the kernel is
    # two large contiguous streams (safer for v7x's 64 MiB physical VMEM).
    if gather_in_kernel is None:
        gather_in_kernel = centers.size * 4 <= 8 * 1024 * 1024

    # Batch tile: one full-batch block when small, else 512-row blocks
    # (multiple of 8 sublanes), shrunk if D is huge so the streams fit VMEM.
    if block_rows is None:
        tb = 512
        n_streams = 1 if gather_in_kernel else 2
        while tb > 8 and 2 * n_streams * tb * D * 4 > 16 * 1024 * 1024:
            tb //= 2
        block_rows = B if B <= tb else tb
    TB = block_rows
    G = pl.cdiv(B, TB)

    # Rough VMEM budget (double-buffered streams + resident centers + temps),
    # with headroom; stays under v7x's 64 MiB physical VMEM.
    lane = lambda n: max(n, 128)
    est = 2 * TB * lane(D) * 4 + 2 * lane(D) * 4
    if gather_in_kernel:
        est += 2 * C * lane(D) * 4 + 2 * TB * 128 * 4      # centers + labels col
        est += TB * lane(C) * 4 + 2 * TB * lane(D) * 4     # onehot + gathered temps
    else:
        est += 2 * TB * lane(D) * 4                        # pre-gathered stream
    vmem_limit = int(min(48 * 2**20, max(32 * 2**20, 2 * est)))

    compiler_params = pltpu.CompilerParams(
        dimension_semantics=("parallel",),   # independent per-block partials
        vmem_limit_bytes=vmem_limit,
    )
    out_shape = jax.ShapeDtypeStruct((G, 1, D), jnp.float32)
    out_spec = pl.BlockSpec((1, 1, D), lambda i: (i, 0, 0))

    if gather_in_kernel:
        kernel = _make_onehot_gather_kernel(B, TB, C, D)
        partials = pl.pallas_call(
            kernel,
            out_shape=out_shape,
            grid_spec=pltpu.PrefetchScalarGridSpec(
                num_scalar_prefetch=0,
                grid=(G,),
                in_specs=[
                    pl.BlockSpec((TB, D), lambda i: (i, 0)),   # x rows
                    pl.BlockSpec((TB, 1), lambda i: (i, 0)),   # labels column
                    pl.BlockSpec((C, D), lambda i: (0, 0)),    # resident centers
                ],
                out_specs=out_spec,
            ),
            compiler_params=compiler_params,
        )(x, labels.reshape(B, 1), centers)
    else:
        # TODO(synk): out-of-range labels clamp here; torch would contribute 0.
        gathered = jnp.take(centers, jnp.clip(labels, 0, C - 1), axis=0)
        kernel = _make_pregather_kernel(B, TB)
        partials = pl.pallas_call(
            kernel,
            out_shape=out_shape,
            grid_spec=pltpu.PrefetchScalarGridSpec(
                num_scalar_prefetch=0,
                grid=(G,),
                in_specs=[
                    pl.BlockSpec((TB, D), lambda i: (i, 0)),
                    pl.BlockSpec((TB, D), lambda i: (i, 0)),
                ],
                out_specs=out_spec,
            ),
            compiler_params=compiler_params,
        )(x, gathered)

    # Tiny cross-block / cross-lane reduction + divide by the true batch size.
    return jnp.sum(partials) / jnp.float32(B)


def center_loss_ref(x, labels, centers):
    # Pure-JAX reference mirroring the PyTorch forward exactly.
    centers = jnp.asarray(centers)
    if centers.ndim == 3:
        centers = centers.reshape(centers.shape[-2], centers.shape[-1])
    B = x.shape[0]
    C = centers.shape[0]
    diff = x[:, None, :] - centers[None, :, :]            # (B, C, D)
    dismat = jnp.sum(diff * diff, axis=2)                 # (B, C)
    mask = (labels[:, None] == jnp.arange(C)[None, :]).astype(jnp.float32)
    return jnp.sum(dismat * mask) / B


if __name__ == "__main__":
    # Demo shapes matching the module defaults: feature_dim=2, classes_num=10.
    feature_dim = 2
    classes_num = 10
    batch = 8

    key = jax.random.PRNGKey(0)
    k_x, k_c, k_l = jax.random.split(key, 3)

    x = jax.random.normal(k_x, (batch, feature_dim), dtype=jnp.float32)
    # Matches nn.Parameter(torch.randn(1, classes_num, feature_dim)).
    centers = jax.random.normal(k_c, (1, classes_num, feature_dim), dtype=jnp.float32)
    labels = jax.random.randint(k_l, (batch,), 0, classes_num, dtype=jnp.int32)

    loss = jax.block_until_ready(center_loss(x, labels, centers))
    loss_ref = jax.block_until_ready(center_loss_ref(x, labels, centers))
    assert jnp.allclose(loss, loss_ref, rtol=1e-5, atol=1e-5), (loss, loss_ref)

    # Larger config: exercises 512-row tiles, ragged tail masking, both gather
    # paths (resident-centers MXU gather and wrapper pre-gather).
    B2, C2, D2 = 1100, 40, 64
    k_x2, k_c2, k_l2 = jax.random.split(jax.random.PRNGKey(1), 3)
    x2 = jax.random.normal(k_x2, (B2, D2), dtype=jnp.float32)
    c2 = jax.random.normal(k_c2, (C2, D2), dtype=jnp.float32)
    l2 = jax.random.randint(k_l2, (B2,), 0, C2, dtype=jnp.int32)
    ref2 = jax.block_until_ready(center_loss_ref(x2, l2, c2))
    for in_kernel in (True, False):
        out2 = jax.block_until_ready(
            center_loss(x2, l2, c2, gather_in_kernel=in_kernel))
        assert jnp.allclose(out2, ref2, rtol=1e-4, atol=1e-4), (in_kernel, out2, ref2)

    print("KERNEL_OK")
</pallas_src>

<mosaic_0001>
module attributes {stable_mosaic.version = 11 : i64} {
  func.func @kernel(%arg0: i32, %arg1: memref<8x2xf32, #tpu.memory_space<vmem>>, %arg2: memref<8x1xi32, #tpu.memory_space<vmem>>, %arg3: memref<10x2xf32, #tpu.memory_space<vmem>>, %arg4: memref<1x1x2xf32, #tpu.memory_space<vmem>>) attributes {dimension_semantics = [#tpu.dimension_semantics<parallel>], iteration_bounds = array<i64: 1>, scalar_prefetch = 0 : i64, scratch_operands = 0 : i64, tpu.core_type = #tpu.core_type<tc>, window_params = [{transform_indices = @transform_0, window_bounds = array<i64: 8, 2>}, {transform_indices = @transform_1, window_bounds = array<i64: 8, 1>}, {pipeline_mode = #tpu.pipeline_mode<synchronous>, transform_indices = @transform_2, window_bounds = array<i64: 10, 2>}, {transform_indices = @transform_3, window_bounds = array<i64: 1, 1, 2>}]} {
    %c0 = arith.constant 0 : index
    %c0_0 = arith.constant 0 : index
    %0 = vector.load %arg1[%c0, %c0_0] : memref<8x2xf32, #tpu.memory_space<vmem>>, vector<8x2xf32>
    %c0_1 = arith.constant 0 : index
    %c0_2 = arith.constant 0 : index
    %1 = vector.load %arg2[%c0_1, %c0_2] : memref<8x1xi32, #tpu.memory_space<vmem>>, vector<8x1xi32>
    %2 = tpu.iota {dimensions = array<i32: 1>} : vector<8x10xi32>
    %3 = vector.broadcast %1 : vector<8x1xi32> to vector<8x10xi32>
    %4 = arith.cmpi eq, %3, %2 : vector<8x10xi32>
    %5 = arith.extui %4 : vector<8x10xi1> to vector<8x10xi32>
    %6 = arith.sitofp %5 : vector<8x10xi32> to vector<8x10xf32>
    %c0_3 = arith.constant 0 : index
    %c0_4 = arith.constant 0 : index
    %7 = vector.load %arg3[%c0_3, %c0_4] : memref<10x2xf32, #tpu.memory_space<vmem>>, vector<10x2xf32>
    %cst = arith.constant dense<0.000000e+00> : vector<8x2xf32>
    %8 = tpu.matmul %6, %7, %cst {dimension_numbers = #tpu.dot_dimension_numbers<[1], [0], [0], [1], [0, 0, 1, 1], [], []>, precision = #tpu.contract_precision<fp32>} : vector<8x10xf32>, vector<10x2xf32>, vector<8x2xf32> -> vector<8x2xf32>
    %9 = arith.subf %0, %8 : vector<8x2xf32>
    %10 = arith.mulf %9, %9 : vector<8x2xf32>
    %cst_5 = arith.constant dense<0.000000e+00> : vector<2xf32>
    %11 = vector.multi_reduction <add>, %10, %cst_5 [0] : vector<8x2xf32> to vector<2xf32>
    %12 = vector.shape_cast %11 : vector<2xf32> to vector<1x2xf32>
    %13 = vector.shape_cast %12 : vector<1x2xf32> to vector<1x1x2xf32>
    %c0_6 = arith.constant 0 : index
    %c0_7 = arith.constant 0 : index
    %c0_8 = arith.constant 0 : index
    %14 = vector.load %arg4[%c0_6, %c0_7, %c0_8] : memref<1x1x2xf32, #tpu.memory_space<vmem>>, vector<1x1x2xf32>
    tpu.vector_store %arg4[%c0_6, %c0_7, %c0_8], %13 {strides = array<i32>} : memref<1x1x2xf32, #tpu.memory_space<vmem>>, vector<1x1x2xf32>,
    return
  }
  func.func @transform_0(%arg0: i32) -> (i32, i32) {
    %c0_i32 = arith.constant 0 : i32
    %c0_i32_0 = arith.constant 0 : i32
    return %arg0, %c0_i32 : i32, i32
  }
  func.func @transform_1(%arg0: i32) -> (i32, i32) {
    %c0_i32 = arith.constant 0 : i32
    %c0_i32_0 = arith.constant 0 : i32
    return %arg0, %c0_i32 : i32, i32
  }
  func.func @transform_2(%arg0: i32) -> (i32, i32) {
    %c0_i32 = arith.constant 0 : i32
    %c0_i32_0 = arith.constant 0 : i32
    %c0_i32_1 = arith.constant 0 : i32
    return %c0_i32, %c0_i32_0 : i32, i32
  }
  func.func @transform_3(%arg0: i32) -> (i32, i32, i32) {
    %c0_i32 = arith.constant 0 : i32
    %c0_i32_0 = arith.constant 0 : i32
    %c0_i32_1 = arith.constant 0 : i32
    return %arg0, %c0_i32, %c0_i32_0 : i32, i32, i32
  }
}

</mosaic_0001>

<llo_original>
// kernel: tpu_custom_call.1
$region0: #{tpu_custom_call.1}
  #allocation0 [shape = 'u32[]', space=smem, size = 0x4, offset = 0x4, fixed_abs, tag = 'smem constant byte address 0x4 - core index']
  #allocation1 [shape = 'u32[144,128]{1,0:T(1,128)}', space=vmem, size = 0x12000, scoped, tag = 'internal scratch']
  %s0 = inlined_call_operand.vmem [shape: f32[8,2], index: 0, kind: input, shape index: {}]
  %s1 = inlined_call_operand.vmem [shape: s32[8,1], index: 1, kind: input, shape index: {}]
  %s2 = inlined_call_operand.vmem [shape: f32[10,2], index: 2, kind: input, shape index: {}]
  %s3 = inlined_call_operand.hbm [shape: f32[1,1,2], index: 3, kind: output, shape index: {}]
  %s4 = sld [smem:[#allocation0]]
  $region22: #{tpu_custom_call.1} parent=0
    _
  %s6 = ssub.s32 1, %s4
  %s7 = scalar_select 0, %s6, %s4
  $region1: #{tpu_custom_call.1} parent=0
    #allocation2 [shape = 'u8[512]{0}', space=vmem, size = 0x400, scoped, tag = 'output window, operand 0, single buffered']
    #allocation3 [shape = 's32[1]{0}', space=sflag, size = 0x4, scoped, tag = 'scoped memory for tpu_custom_call.1']
    %8 = vsyncpa [#allocation3], 0
    // Predicated region
    $region2: #{tpu_custom_call.1} parent=1 // pred_check
      _
    $region3: #{tpu_custom_call.1} parent=1 // pred_check_branch
      %10 = sbr.rel (0) target = $region5
    $region4: #{tpu_custom_call.1} parent=1 // pred_region
      _
    $region5: #{tpu_custom_call.1} parent=1 // pred_fallthru
      _
    // Predicated region
    $region6: #{tpu_custom_call.1} parent=1 // pred_check
      _
    $region7: #{tpu_custom_call.1} parent=1 // pred_check_branch
      %12 = sbr.rel (0) target = $region9
    $region8: #{tpu_custom_call.1} parent=1 // pred_region
      _
    $region9: #{tpu_custom_call.1} parent=1 // pred_fallthru
      _
    // Predicated region
    $region10: #{tpu_custom_call.1} parent=1 // pred_check
      _
    $region11: #{tpu_custom_call.1} parent=1 // pred_check_branch
      %14 = sbr.rel (0) target = $region13
    $region12: #{tpu_custom_call.1} parent=1 // pred_region
      _
    $region13: #{tpu_custom_call.1} parent=1 // pred_fallthru
      _
    %v15 = vld [vmem:[%s0] sm:$0xff]
    %v16 = vld [vmem:[%s1] sm:$0xff]
    %v17 = vlaneseq
    %v18 = vand.u32 %v17, 127
    %19 = vset.pattern.permute.xlu0 0
    %20 = vperm.xlu0 %19, %v16
    %v21 = vpop.permute.xlu0 %20
    %vm22 = vcmp.eq.s32.totalorder %v21, %v18
    %v23 = vsel %vm22, 1, 0
    %v24 = vcvt.s32.f32 %v23
    %v25 = vld [vmem:[%s2] sm:$0xff]
    %v26 = vld [vmem:[%s2 + $0x8] sm:$0x3]
    %vm27 = vcmask 80896
    %v29 = vsel %vm27, %v24, 0
    %vm31 = vcmask 1041408
    %v33 = vsel %vm31, %v26, 0
    %35 = vmatprep.subr.mxu0 0.0
    %v36 = vand.u32 %v25, 4294901760
    %37 = vmatpush1.msra.mxu0 %v36
    %38 = vmatprep.subr.mxu0 0.0
    %v39 = vand.u32 %v33, 4294901760
    %40 = vmatpush1.msra.mxu0 %v39
    %41 = vmatprep.subr.mxu0 0.0
    %42 = vmatpush1.msra.mxu0 0.0
    %43 = vmatprep.subr.mxu0 0.0
    %44 = vmatpush1.msra.mxu0 0.0
    %45 = vmatprep.subr.mxu0 0.0
    %46 = vmatpush1.msra.mxu0 0.0
    %47 = vmatprep.subr.mxu0 0.0
    %48 = vmatpush1.msra.mxu0 0.0
    %49 = vmatprep.subr.mxu0 0.0
    %50 = vmatpush1.msra.mxu0 0.0
    %51 = vmatprep.subr.mxu0 0.0
    %52 = vmatpush1.msra.mxu0 0.0
    %53 = vmatprep.subr.mxu0 0.0
    %54 = vmatpush1.msra.mxu0 0.0
    %55 = vmatprep.subr.mxu0 0.0
    %56 = vmatpush1.msra.mxu0 0.0
    %57 = vmatprep.subr.mxu0 0.0
    %58 = vmatpush1.msra.mxu0 0.0
    %59 = vmatprep.subr.mxu0 0.0
    %60 = vmatpush1.msra.mxu0 0.0
    %61 = vmatprep.subr.mxu0 0.0
    %62 = vmatpush1.msra.mxu0 0.0
    %63 = vmatprep.subr.mxu0 0.0
    %64 = vmatpush1.msra.mxu0 0.0
    %65 = vmatprep.subr.mxu0 0.0
    %66 = vmatpush1.msra.mxu0 0.0
    %67 = vmatprep.subr.mxu0 0.0
    %68 = vmatpush1.msra.mxu0 0.0
    %69 = vmatprep.subr.mxu0 0.0
    %70 = vmatpush1.msra.mxu0 0.0
    %71 = vmatprep.subr.mxu0 0.0
    %72 = vmatpush1.msra.mxu0 0.0
    %73 = vmatprep.subr.mxu0 0.0
    %74 = vmatpush1.msra.mxu0 0.0
    %75 = vmatprep.subr.mxu0 0.0
    %76 = vmatpush1.msra.mxu0 0.0
    %77 = vmatprep.subr.mxu0 0.0
    %78 = vmatpush1.msra.mxu0 0.0
    %79 = vmatprep.subr.mxu0 0.0
    %80 = vmatpush1.msra.mxu0 0.0
    %81 = vmatprep.subr.mxu0 0.0
    %82 = vmatpush1.msra.mxu0 0.0
    %83 = vmatprep.subr.mxu0 0.0
    %84 = vmatpush1.msra.mxu0 0.0
    %85 = vmatprep.subr.mxu0 0.0
    %86 = vmatpush1.msra.mxu0 0.0
    %87 = vmatprep.subr.mxu0 0.0
    %88 = vmatpush1.msra.mxu0 0.0
    %89 = vmatprep.subr.mxu0 0.0
    %90 = vmatpush1.msra.mxu0 0.0
    %91 = vmatprep.subr.mxu0 0.0
    %92 = vmatpush1.msra.mxu0 0.0
    %93 = vmatprep.subr.mxu0 0.0
    %94 = vmatpush1.msra.mxu0 0.0
    %95 = vmatprep.subr.mxu0 0.0
    %96 = vmatpush1.msra.mxu0 0.0
    %97 = vmatprep.subr.mxu0 0.0
    %98 = vmatpush1.msra.mxu0 0.0
    %99 = vmatprep.subr.mxu0 0.0
    %100 = vmatpush1.msra.mxu0 0.0
    %101 = vmatprep.mubr.f32.mxu0 0.0
    %v102 = vand.u32 %v29, 4294901760
    %v103 = vsub.f32 %v29, %v102
    %v104 = vand.u32 %v103, 4294901760
    %v105 = vsub.f32 %v103, %v104
    %v106 = vand.u32 %v105, 4294901760
    %107 = vmatmul.mubr.f32.gmra.mrb[0].mxu0 %v106
    %v108 = vpop.f32.mrb[0].mxu0
    %v109 = vadd.f32 0.0, %v108
    %v110 = vpop.f32.mrb[0].mxu0
    %111 = vdwg.mxu0
    %112 = vmatprep.subr.mxu0 0.0
    %v113 = vand.u32 %v25, 4294901760
    %v114 = vsub.f32 %v25, %v113
    %v115 = vand.u32 %v114, 4294901760
    %v116 = vsub.f32 %v114, %v115
    %v117 = vand.u32 %v116, 4294901760
    %118 = vmatpush1.msra.mxu0 %v117
    %119 = vmatprep.subr.mxu0 0.0
    %v120 = vand.u32 %v33, 4294901760
    %v121 = vsub.f32 %v33, %v120
    %v122 = vand.u32 %v121, 4294901760
    %v123 = vsub.f32 %v121, %v122
    %v124 = vand.u32 %v123, 4294901760
    %125 = vmatpush1.msra.mxu0 %v124
    %126 = vmatprep.subr.mxu0 0.0
    %127 = vmatpush1.msra.mxu0 0.0
    %128 = vmatprep.subr.mxu0 0.0
    %129 = vmatpush1.msra.mxu0 0.0
    %130 = vmatprep.subr.mxu0 0.0
    %131 = vmatpush1.msra.mxu0 0.0
    %132 = vmatprep.subr.mxu0 0.0
    %133 = vmatpush1.msra.mxu0 0.0
    %134 = vmatprep.subr.mxu0 0.0
    %135 = vmatpush1.msra.mxu0 0.0
    %136 = vmatprep.subr.mxu0 0.0
    %137 = vmatpush1.msra.mxu0 0.0
    %138 = vmatprep.subr.mxu0 0.0
    %139 = vmatpush1.msra.mxu0 0.0
    %140 = vmatprep.subr.mxu0 0.0
    %141 = vmatpush1.msra.mxu0 0.0
    %142 = vmatprep.subr.mxu0 0.0
    %143 = vmatpush1.msra.mxu0 0.0
    %144 = vmatprep.subr.mxu0 0.0
    %145 = vmatpush1.msra.mxu0 0.0
    %146 = vmatprep.subr.mxu0 0.0
    %147 = vmatpush1.msra.mxu0 0.0
    %148 = vmatprep.subr.mxu0 0.0
    %149 = vmatpush1.msra.mxu0 0.0
    %150 = vmatprep.subr.mxu0 0.0
    %151 = vmatpush1.msra.mxu0 0.0
    %152 = vmatprep.subr.mxu0 0.0
    %153 = vmatpush1.msra.mxu0 0.0
    %154 = vmatprep.subr.mxu0 0.0
    %155 = vmatpush1.msra.mxu0 0.0
    %156 = vmatprep.subr.mxu0 0.0
    %157 = vmatpush1.msra.mxu0 0.0
    %158 = vmatprep.subr.mxu0 0.0
    %159 = vmatpush1.msra.mxu0 0.0
    %160 = vmatprep.subr.mxu0 0.0
    %161 = vmatpush1.msra.mxu0 0.0
    %162 = vmatprep.subr.mxu0 0.0
    %163 = vmatpush1.msra.mxu0 0.0
    %164 = vmatprep.subr.mxu0 0.0
    %165 = vmatpush1.msra.mxu0 0.0
    %166 = vmatprep.subr.mxu0 0.0
    %167 = vmatpush1.msra.mxu0 0.0
    %168 = vmatprep.subr.mxu0 0.0
    %169 = vmatpush1.msra.mxu0 0.0
    %170 = vmatprep.subr.mxu0 0.0
    %171 = vmatpush1.msra.mxu0 0.0
    %172 = vmatprep.subr.mxu0 0.0
    %173 = vmatpush1.msra.mxu0 0.0
    %174 = vmatprep.subr.mxu0 0.0
    %175 = vmatpush1.msra.mxu0 0.0
    %176 = vmatprep.subr.mxu0 0.0
    %177 = vmatpush1.msra.mxu0 0.0
    %178 = vmatprep.subr.mxu0 0.0
    %179 = vmatpush1.msra.mxu0 0.0
    %180 = vmatprep.subr.mxu0 0.0
    %181 = vmatpush1.msra.mxu0 0.0
    %182 = vmatprep.subr.mxu0 0.0
    %183 = vmatpush1.msra.mxu0 0.0
    %184 = vmatprep.subr.mxu0 0.0
    %185 = vmatpush1.msra.mxu0 0.0
    %186 = vmatprep.mubr.f32.mxu0 0.0
    %v187 = vand.u32 %v29, 4294901760
    %188 = vmatmul.mubr.f32.gmra.mrb[0].mxu0 %v187
    %v189 = vpop.f32.mrb[0].mxu0
    %v190 = vadd.f32 %v109, %v189
    %v191 = vpop.f32.mrb[0].mxu0
    %192 = vdwg.mxu0
    %193 = vmatprep.subr.mxu0 0.0
    %v194 = vand.u32 %v25, 4294901760
    %v195 = vsub.f32 %v25, %v194
    %196 = vmatpush1.msra.mxu0 %v195
    %197 = vmatprep.subr.mxu0 0.0
    %v198 = vand.u32 %v33, 4294901760
    %v199 = vsub.f32 %v33, %v198
    %200 = vmatpush1.msra.mxu0 %v199
    %201 = vmatprep.subr.mxu0 0.0
    %202 = vmatpush1.msra.mxu0 0.0
    %203 = vmatprep.subr.mxu0 0.0
    %204 = vmatpush1.msra.mxu0 0.0
    %205 = vmatprep.subr.mxu0 0.0
    %206 = vmatpush1.msra.mxu0 0.0
    %207 = vmatprep.subr.mxu0 0.0
    %208 = vmatpush1.msra.mxu0 0.0
    %209 = vmatprep.subr.mxu0 0.0
    %210 = vmatpush1.msra.mxu0 0.0
    %211 = vmatprep.subr.mxu0 0.0
    %212 = vmatpush1.msra.mxu0 0.0
    %213 = vmatprep.subr.mxu0 0.0
    %214 = vmatpush1.msra.mxu0 0.0
    %215 = vmatprep.subr.mxu0 0.0
    %216 = vmatpush1.msra.mxu0 0.0
    %217 = vmatprep.subr.mxu0 0.0
    %218 = vmatpush1.msra.mxu0 0.0
    %219 = vmatprep.subr.mxu0 0.0
    %220 = vmatpush1.msra.mxu0 0.0
    %221 = vmatprep.subr.mxu0 0.0
    %222 = vmatpush1.msra.mxu0 0.0
    %223 = vmatprep.subr.mxu0 0.0
    %224 = vmatpush1.msra.mxu0 0.0
    %225 = vmatprep.subr.mxu0 0.0
    %226 = vmatpush1.msra.mxu0 0.0
    %227 = vmatprep.subr.mxu0 0.0
    %228 = vmatpush1.msra.mxu0 0.0
    %229 = vmatprep.subr.mxu0 0.0
    %230 = vmatpush1.msra.mxu0 0.0
    %231 = vmatprep.subr.mxu0 0.0
    %232 = vmatpush1.msra.mxu0 0.0
    %233 = vmatprep.subr.mxu0 0.0
    %234 = vmatpush1.msra.mxu0 0.0
    %235 = vmatprep.subr.mxu0 0.0
    %236 = vmatpush1.msra.mxu0 0.0
    %237 = vmatprep.subr.mxu0 0.0
    %238 = vmatpush1.msra.mxu0 0.0
    %239 = vmatprep.subr.mxu0 0.0
    %240 = vmatpush1.msra.mxu0 0.0
    %241 = vmatprep.subr.mxu0 0.0
    %242 = vmatpush1.msra.mxu0 0.0
    %243 = vmatprep.subr.mxu0 0.0
    %244 = vmatpush1.msra.mxu0 0.0
    %245 = vmatprep.subr.mxu0 0.0
    %246 = vmatpush1.msra.mxu0 0.0
    %247 = vmatprep.subr.mxu0 0.0
    %248 = vmatpush1.msra.mxu0 0.0
    %249 = vmatprep.subr.mxu0 0.0
    %250 = vmatpush1.msra.mxu0 0.0
    %251 = vmatprep.subr.mxu0 0.0
    %252 = vmatpush1.msra.mxu0 0.0
    %253 = vmatprep.subr.mxu0 0.0
    %254 = vmatpush1.msra.mxu0 0.0
    %255 = vmatprep.subr.mxu0 0.0
    %256 = vmatpush1.msra.mxu0 0.0
    %257 = vmatprep.subr.mxu0 0.0
    %258 = vmatpush1.msra.mxu0 0.0
    %259 = vmatprep.subr.mxu0 0.0
    %260 = vmatpush1.msra.mxu0 0.0
    %261 = vmatprep.mubr.f32.mxu0 0.0
    %v262 = vand.u32 %v29, 4294901760
    %v263 = vsub.f32 %v29, %v262
    %264 = vmatmul.mubr.f32.gmra.mrb[0].mxu0 %v263
    %v265 = vpop.f32.mrb[0].mxu0
    %v266 = vadd.f32 %v190, %v265
    %v267 = vpop.f32.mrb[0].mxu0
    %268 = vdwg.mxu0
    %269 = vmatprep.subr.mxu0 0.0
    %v270 = vand.u32 %v25, 4294901760
    %271 = vmatpush1.msra.mxu0 %v270
    %272 = vmatprep.subr.mxu0 0.0
    %v273 = vand.u32 %v33, 4294901760
    %274 = vmatpush1.msra.mxu0 %v273
    %275 = vmatprep.subr.mxu0 0.0
    %276 = vmatpush1.msra.mxu0 0.0
    %277 = vmatprep.subr.mxu0 0.0
    %278 = vmatpush1.msra.mxu0 0.0
    %279 = vmatprep.subr.mxu0 0.0
    %280 = vmatpush1.msra.mxu0 0.0
    %281 = vmatprep.subr.mxu0 0.0
    %282 = vmatpush1.msra.mxu0 0.0
    %283 = vmatprep.subr.mxu0 0.0
    %284 = vmatpush1.msra.mxu0 0.0
    %285 = vmatprep.subr.mxu0 0.0
    %286 = vmatpush1.msra.mxu0 0.0
    %287 = vmatprep.subr.mxu0 0.0
    %288 = vmatpush1.msra.mxu0 0.0
    %289 = vmatprep.subr.mxu0 0.0
    %290 = vmatpush1.msra.mxu0 0.0
    %291 = vmatprep.subr.mxu0 0.0
    %292 = vmatpush1.msra.mxu0 0.0
    %293 = vmatprep.subr.mxu0 0.0
    %294 = vmatpush1.msra.mxu0 0.0
    %295 = vmatprep.subr.mxu0 0.0
    %296 = vmatpush1.msra.mxu0 0.0
    %297 = vmatprep.subr.mxu0 0.0
    %298 = vmatpush1.msra.mxu0 0.0
    %299 = vmatprep.subr.mxu0 0.0
    %300 = vmatpush1.msra.mxu0 0.0
    %301 = vmatprep.subr.mxu0 0.0
    %302 = vmatpush1.msra.mxu0 0.0
    %303 = vmatprep.subr.mxu0 0.0
    %304 = vmatpush1.msra.mxu0 0.0
    %305 = vmatprep.subr.mxu0 0.0
    %306 = vmatpush1.msra.mxu0 0.0
    %307 = vmatprep.subr.mxu0 0.0
    %308 = vmatpush1.msra.mxu0 0.0
    %309 = vmatprep.subr.mxu0 0.0
    %310 = vmatpush1.msra.mxu0 0.0
    %311 = vmatprep.subr.mxu0 0.0
    %312 = vmatpush1.msra.mxu0 0.0
    %313 = vmatprep.subr.mxu0 0.0
    %314 = vmatpush1.msra.mxu0 0.0
    %315 = vmatprep.subr.mxu0 0.0
    %316 = vmatpush1.msra.mxu0 0.0
    %317 = vmatprep.subr.mxu0 0.0
    %318 = vmatpush1.msra.mxu0 0.0
    %319 = vmatprep.subr.mxu0 0.0
    %320 = vmatpush1.msra.mxu0 0.0
    %321 = vmatprep.subr.mxu0 0.0
    %322 = vmatpush1.msra.mxu0 0.0
    %323 = vmatprep.subr.mxu0 0.0
    %324 = vmatpush1.msra.mxu0 0.0
    %325 = vmatprep.subr.mxu0 0.0
    %326 = vmatpush1.msra.mxu0 0.0
    %327 = vmatprep.subr.mxu0 0.0
    %328 = vmatpush1.msra.mxu0 0.0
    %329 = vmatprep.subr.mxu0 0.0
    %330 = vmatpush1.msra.mxu0 0.0
    %331 = vmatprep.subr.mxu0 0.0
    %332 = vmatpush1.msra.mxu0 0.0
    %333 = vmatprep.subr.mxu0 0.0
    %334 = vmatpush1.msra.mxu0 0.0
    %335 = vmatprep.mubr.f32.mxu0 0.0
    %v336 = vand.u32 %v29, 4294901760
    %v337 = vsub.f32 %v29, %v336
    %v338 = vand.u32 %v337, 4294901760
    %339 = vmatmul.mubr.f32.gmra.mrb[0].mxu0 %v338
    %v340 = vpop.f32.mrb[0].mxu0
    %v341 = vadd.f32 %v266, %v340
    %v342 = vpop.f32.mrb[0].mxu0
    %343 = vdwg.mxu0
    %344 = vmatprep.subr.mxu0 0.0
    %v345 = vand.u32 %v25, 4294901760
    %v346 = vsub.f32 %v25, %v345
    %v347 = vand.u32 %v346, 4294901760
    %348 = vmatpush1.msra.mxu0 %v347
    %349 = vmatprep.subr.mxu0 0.0
    %v350 = vand.u32 %v33, 4294901760
    %v351 = vsub.f32 %v33, %v350
    %v352 = vand.u32 %v351, 4294901760
    %353 = vmatpush1.msra.mxu0 %v352
    %354 = vmatprep.subr.mxu0 0.0
    %355 = vmatpush1.msra.mxu0 0.0
    %356 = vmatprep.subr.mxu0 0.0
    %357 = vmatpush1.msra.mxu0 0.0
    %358 = vmatprep.subr.mxu0 0.0
    %359 = vmatpush1.msra.mxu0 0.0
    %360 = vmatprep.subr.mxu0 0.0
    %361 = vmatpush1.msra.mxu0 0.0
    %362 = vmatprep.subr.mxu0 0.0
    %363 = vmatpush1.msra.mxu0 0.0
    %364 = vmatprep.subr.mxu0 0.0
    %365 = vmatpush1.msra.mxu0 0.0
    %366 = vmatprep.subr.mxu0 0.0
    %367 = vmatpush1.msra.mxu0 0.0
    %368 = vmatprep.subr.mxu0 0.0
    %369 = vmatpush1.msra.mxu0 0.0
    %370 = vmatprep.subr.mxu0 0.0
    %371 = vmatpush1.msra.mxu0 0.0
    %372 = vmatprep.subr.mxu0 0.0
    %373 = vmatpush1.msra.mxu0 0.0
    %374 = vmatprep.subr.mxu0 0.0
    %375 = vmatpush1.msra.mxu0 0.0
    %376 = vmatprep.subr.mxu0 0.0
    %377 = vmatpush1.msra.mxu0 0.0
    %378 = vmatprep.subr.mxu0 0.0
    %379 = vmatpush1.msra.mxu0 0.0
    %380 = vmatprep.subr.mxu0 0.0
    %381 = vmatpush1.msra.mxu0 0.0
    %382 = vmatprep.subr.mxu0 0.0
    %383 = vmatpush1.msra.mxu0 0.0
    %384 = vmatprep.subr.mxu0 0.0
    %385 = vmatpush1.msra.mxu0 0.0
    %386 = vmatprep.subr.mxu0 0.0
    %387 = vmatpush1.msra.mxu0 0.0
    %388 = vmatprep.subr.mxu0 0.0
    %389 = vmatpush1.msra.mxu0 0.0
    %390 = vmatprep.subr.mxu0 0.0
    %391 = vmatpush1.msra.mxu0 0.0
    %392 = vmatprep.subr.mxu0 0.0
    %393 = vmatpush1.msra.mxu0 0.0
    %394 = vmatprep.subr.mxu0 0.0
    %395 = vmatpush1.msra.mxu0 0.0
    %396 = vmatprep.subr.mxu0 0.0
    %397 = vmatpush1.msra.mxu0 0.0
    %398 = vmatprep.subr.mxu0 0.0
    %399 = vmatpush1.msra.mxu0 0.0
    %400 = vmatprep.subr.mxu0 0.0
    %401 = vmatpush1.msra.mxu0 0.0
    %402 = vmatprep.subr.mxu0 0.0
    %403 = vmatpush1.msra.mxu0 0.0
    %404 = vmatprep.subr.mxu0 0.0
    %405 = vmatpush1.msra.mxu0 0.0
    %406 = vmatprep.subr.mxu0 0.0
    %407 = vmatpush1.msra.mxu0 0.0
    %408 = vmatprep.subr.mxu0 0.0
    %409 = vmatpush1.msra.mxu0 0.0
    %410 = vmatprep.subr.mxu0 0.0
    %411 = vmatpush1.msra.mxu0 0.0
    %412 = vmatprep.subr.mxu0 0.0
    %413 = vmatpush1.msra.mxu0 0.0
    %414 = vmatprep.mubr.f32.mxu0 0.0
    %v415 = vand.u32 %v29, 4294901760
    %416 = vmatmul.mubr.f32.gmra.mrb[0].mxu0 %v415
    %v417 = vpop.f32.mrb[0].mxu0
    %v418 = vadd.f32 %v341, %v417
    %v419 = vpop.f32.mrb[0].mxu0
    %420 = vdwg.mxu0
    %421 = vmatprep.subr.mxu0 0.0
    %v422 = vand.u32 %v25, 4294901760
    %423 = vmatpush1.msra.mxu0 %v422
    %424 = vmatprep.subr.mxu0 0.0
    %v425 = vand.u32 %v33, 4294901760
    %426 = vmatpush1.msra.mxu0 %v425
    %427 = vmatprep.subr.mxu0 0.0
    %428 = vmatpush1.msra.mxu0 0.0
    %429 = vmatprep.subr.mxu0 0.0
    %430 = vmatpush1.msra.mxu0 0.0
    %431 = vmatprep.subr.mxu0 0.0
    %432 = vmatpush1.msra.mxu0 0.0
    %433 = vmatprep.subr.mxu0 0.0
    %434 = vmatpush1.msra.mxu0 0.0
    %435 = vmatprep.subr.mxu0 0.0
    %436 = vmatpush1.msra.mxu0 0.0
    %437 = vmatprep.subr.mxu0 0.0
    %438 = vmatpush1.msra.mxu0 0.0
    %439 = vmatprep.subr.mxu0 0.0
    %440 = vmatpush1.msra.mxu0 0.0
    %441 = vmatprep.subr.mxu0 0.0
    %442 = vmatpush1.msra.mxu0 0.0
    %443 = vmatprep.subr.mxu0 0.0
    %444 = vmatpush1.msra.mxu0 0.0
    %445 = vmatprep.subr.mxu0 0.0
    %446 = vmatpush1.msra.mxu0 0.0
    %447 = vmatprep.subr.mxu0 0.0
    %448 = vmatpush1.msra.mxu0 0.0
    %449 = vmatprep.subr.mxu0 0.0
    %450 = vmatpush1.msra.mxu0 0.0
    %451 = vmatprep.subr.mxu0 0.0
    %452 = vmatpush1.msra.mxu0 0.0
    %453 = vmatprep.subr.mxu0 0.0
    %454 = vmatpush1.msra.mxu0 0.0
    %455 = vmatprep.subr.mxu0 0.0
    %456 = vmatpush1.msra.mxu0 0.0
    %457 = vmatprep.subr.mxu0 0.0
    %458 = vmatpush1.msra.mxu0 0.0
    %459 = vmatprep.subr.mxu0 0.0
    %460 = vmatpush1.msra.mxu0 0.0
    %461 = vmatprep.subr.mxu0 0.0
    %462 = vmatpush1.msra.mxu0 0.0
    %463 = vmatprep.subr.mxu0 0.0
    %464 = vmatpush1.msra.mxu0 0.0
    %465 = vmatprep.subr.mxu0 0.0
    %466 = vmatpush1.msra.mxu0 0.0
    %467 = vmatprep.subr.mxu0 0.0
    %468 = vmatpush1.msra.mxu0 0.0
    %469 = vmatprep.subr.mxu0 0.0
    %470 = vmatpush1.msra.mxu0 0.0
    %471 = vmatprep.subr.mxu0 0.0
    %472 = vmatpush1.msra.mxu0 0.0
    %473 = vmatprep.subr.mxu0 0.0
    %474 = vmatpush1.msra.mxu0 0.0
    %475 = vmatprep.subr.mxu0 0.0
    %476 = vmatpush1.msra.mxu0 0.0
    %477 = vmatprep.subr.mxu0 0.0
    %478 = vmatpush1.msra.mxu0 0.0
    %479 = vmatprep.subr.mxu0 0.0
    %480 = vmatpush1.msra.mxu0 0.0
    %481 = vmatprep.subr.mxu0 0.0
    %482 = vmatpush1.msra.mxu0 0.0
    %483 = vmatprep.subr.mxu0 0.0
    %484 = vmatpush1.msra.mxu0 0.0
    %485 = vmatprep.subr.mxu0 0.0
    %486 = vmatpush1.msra.mxu0 0.0
    %487 = vmatprep.mubr.f32.mxu0 0.0
    %v488 = vand.u32 %v29, 4294901760
    %489 = vmatmul.mubr.f32.gmra.mrb[0].mxu0 %v488
    %v490 = vpop.f32.mrb[0].mxu0
    %v491 = vadd.f32 %v418, %v490
    %v492 = vpop.f32.mrb[0].mxu0
    %493 = vdwg.mxu0
    %v494 = vsub.f32 %v15, %v491
    %v495 = vmul.f32 %v494, %v494
    %vm496 = vcmask 15360
    %v497 = vsel %vm496, %v495, 0.0
    %v498 = vrot.slane %v497, 4
    %v499 = vadd.f32 %v497, %v498
    %v500 = vrot.slane %v499, 2
    %v501 = vadd.f32 %v499, %v500
    %v502 = vrot.slane %v501, 1
    %v503 = vadd.f32 %v501, %v502
    %vm504 = vcmask 8192
    %505 = vst.msk [vmem:[#allocation2] sm:$0x1] %vm504, %v503
    // Predicated region
    $region14: #{tpu_custom_call.1} parent=1 // pred_check
      _
    $region15: #{tpu_custom_call.1} parent=1 // pred_check_branch
      %507 = sbr.rel (0) target = $region17
    $region16: #{tpu_custom_call.1} parent=1 // pred_region
      %s509 = ssub.s32 16, 16
      %510 = vsyncadd [#allocation3], %s509
      %s512 = sshll.u32 [#allocation2], 4
      %s513 = int_to_ptr.vmem [resolvable:$true] %s512
      %515 = dma.vmem_to_hbm [thread:$0]  %s513, 16, %s3, [#allocation3]
    $region17: #{tpu_custom_call.1} parent=1 // pred_fallthru
      _
    // Predicated region
    $region18: #{tpu_custom_call.1} parent=1 // pred_check
      _
    $region19: #{tpu_custom_call.1} parent=1 // pred_check_branch
      %517 = sbr.rel (0) target = $region21
    $region20: #{tpu_custom_call.1} parent=1 // pred_region
      %518 = dma.done [#allocation3], 16
    $region21: #{tpu_custom_call.1} parent=1 // pred_fallthru
      _
    %519 = vsyncpa [#allocation3], 1

</llo_original>
